<compile_context>
chip_gen: v5e
topology: v5e:2x2
jax: 0.10.0
libtpu: 0.0.40
codegen_flags: <defaults>
</compile_context>

<pallas_src>
import jax
import jax.numpy as jnp
from jax.experimental import pallas as pl
from jax.experimental.pallas import tpu as pltpu  # noqa: F401  (TPU backend)


def mpc_encode_kernel(obs_ref, w_ref, b_ref, z_ref):
    """z = obs @ W_fold + b_fold, with the K=NX contraction unrolled on the VPU.

    obs_ref : (B, NX)   raw observation (scaling already folded into W/b)
    w_ref   : (NX, NZ)  folded encoder weight
    b_ref   : (1, NZ)   folded encoder bias
    z_ref   : (B, NZ)   output z_init
    """
    obs = obs_ref[...]
    w = w_ref[...]
    z = b_ref[...]                       # (1, NZ); broadcasts to (B, NZ) on first add
    nx = obs.shape[1]                    # static (2) -> unrolled at trace time
    for k in range(nx):
        # Broadcast multiply-add on the VPU; no MXU for a K=2 contraction.
        z = z + obs[:, k:k + 1] * w[k:k + 1, :]
    z_ref[...] = z.astype(z_ref.dtype)


def make_mpc_policy_forward(w_enc, b_enc, min_state, max_state):
    """Fold scale_state into the encoder ONCE (construction time) and return a
    jitted forward whose per-call tensor work is a single Pallas kernel."""
    w_enc = jnp.asarray(w_enc, jnp.float32)            # (NZ, NX) torch layout
    b_enc = jnp.asarray(b_enc, jnp.float32)            # (NZ,)
    min_state = jnp.asarray(min_state, jnp.float32)    # (NX,)
    max_state = jnp.asarray(max_state, jnp.float32)    # (NX,)

    rng = max_state - min_state
    # The module intentionally swaps min/max (range is negative); only a zero
    # range would be a silent inf/nan source, so guard it here.
    if bool(jnp.any(rng == 0.0)):
        raise ValueError("max_state == min_state on some component; "
                         "scale_state would divide by zero.")

    a = 2.0 / rng                                      # (NX,)
    c = -min_state * a - 1.0                           # (NX,)
    w_fold = jax.device_put(a[:, None] * w_enc.T)      # (NX, NZ)
    b_fold = jax.device_put((c @ w_enc.T + b_enc).reshape(1, -1))  # (1, NZ)
    nz = w_fold.shape[1]

    def _encode(obs_2d):
        bsz = obs_2d.shape[0]
        # Gridless pallas_call: full arrays land in VMEM, no pipeline overhead.
        return pl.pallas_call(
            mpc_encode_kernel,
            out_shape=jax.ShapeDtypeStruct((bsz, nz), jnp.float32),
        )(obs_2d, w_fold, b_fold)

    @jax.jit
    def forward(observation):
        obs = jnp.asarray(observation, jnp.float32)
        if obs.ndim == 1:
            obs = obs[None, :]                         # observation.unsqueeze(0)
        z_init = _encode(obs)
        # TODO(synk): action = optlayer(Az, Au, ZtoX, z_init) -- CvxpyLayer MPC
        # QP solve has no Pallas equivalent; return z_init instead.
        return z_init

    return forward


if __name__ == "__main__":
    key = jax.random.PRNGKey(0)
    k_obs, k_w, k_b = jax.random.split(key, 3)

    # Shapes implied by the module: num_x = 2 (CSTR1 state), NZ = Koopman latent.
    B, NX, NZ = 8, 2, 16

    observation = jax.random.normal(k_obs, (B, NX), dtype=jnp.float32) * 20.0 + 60.0
    w_enc = jax.random.normal(k_w, (NZ, NX), dtype=jnp.float32) * 0.1   # XtoZ weight
    b_enc = jax.random.normal(k_b, (NZ,), dtype=jnp.float32) * 0.01     # XtoZ bias

    # Constants copied from the module (min/max intentionally swapped, as in torch).
    max_state = jnp.array([34.946917, 30.485979], dtype=jnp.float32)
    min_state = jnp.array([90.839534, 60.022752], dtype=jnp.float32)

    forward = make_mpc_policy_forward(w_enc, b_enc, min_state, max_state)
    z_init = jax.block_until_ready(forward(observation))

    # Plain-JAX reference of the (unfused) implemented path.
    s_ref = 2.0 * (observation - min_state) / (max_state - min_state) - 1.0
    z_ref = s_ref @ w_enc.T + b_enc
    assert z_init.shape == (B, NZ)
    assert jnp.allclose(z_init, z_ref, atol=1e-4, rtol=1e-4), (
        float(jnp.max(jnp.abs(z_init - z_ref))))

    # Also exercise the 1-D (unsqueeze) path.
    z1 = jax.block_until_ready(forward(observation[0]))
    assert z1.shape == (1, NZ)
    assert jnp.allclose(z1, z_ref[0:1], atol=1e-4, rtol=1e-4)

    print("KERNEL_OK")
</pallas_src>

<mosaic_0001>
module attributes {stable_mosaic.version = 11 : i64} {
  func.func @mpc_encode_kernel(%arg0: memref<8x2xf32, #tpu.memory_space<vmem>>, %arg1: memref<2x16xf32, #tpu.memory_space<vmem>>, %arg2: memref<1x16xf32, #tpu.memory_space<vmem>>, %arg3: memref<8x16xf32, #tpu.memory_space<vmem>>) attributes {dimension_semantics = [], scalar_prefetch = 0 : i64, scratch_operands = 0 : i64, tpu.core_type = #tpu.core_type<tc>} {
    %c0 = arith.constant 0 : index
    %c0_0 = arith.constant 0 : index
    %0 = vector.load %arg0[%c0, %c0_0] : memref<8x2xf32, #tpu.memory_space<vmem>>, vector<8x2xf32>
    %c0_1 = arith.constant 0 : index
    %c0_2 = arith.constant 0 : index
    %1 = vector.load %arg1[%c0_1, %c0_2] : memref<2x16xf32, #tpu.memory_space<vmem>>, vector<2x16xf32>
    %c0_3 = arith.constant 0 : index
    %c0_4 = arith.constant 0 : index
    %2 = vector.load %arg2[%c0_3, %c0_4] : memref<1x16xf32, #tpu.memory_space<vmem>>, vector<1x16xf32>
    %3 = vector.extract_strided_slice %0 {offsets = [0, 0], sizes = [8, 1], strides = [1, 1]} : vector<8x2xf32> to vector<8x1xf32>
    %4 = vector.extract_strided_slice %1 {offsets = [0, 0], sizes = [1, 16], strides = [1, 1]} : vector<2x16xf32> to vector<1x16xf32>
    %5 = vector.broadcast %3 : vector<8x1xf32> to vector<8x16xf32>
    %6 = vector.broadcast %4 : vector<1x16xf32> to vector<8x16xf32>
    %7 = arith.mulf %5, %6 : vector<8x16xf32>
    %8 = vector.broadcast %2 : vector<1x16xf32> to vector<8x16xf32>
    %9 = arith.addf %8, %7 : vector<8x16xf32>
    %10 = vector.extract_strided_slice %0 {offsets = [0, 1], sizes = [8, 1], strides = [1, 1]} : vector<8x2xf32> to vector<8x1xf32>
    %11 = vector.extract_strided_slice %1 {offsets = [1, 0], sizes = [1, 16], strides = [1, 1]} : vector<2x16xf32> to vector<1x16xf32>
    %12 = vector.broadcast %10 : vector<8x1xf32> to vector<8x16xf32>
    %13 = vector.broadcast %11 : vector<1x16xf32> to vector<8x16xf32>
    %14 = arith.mulf %12, %13 : vector<8x16xf32>
    %15 = arith.addf %9, %14 : vector<8x16xf32>
    %c0_5 = arith.constant 0 : index
    %c0_6 = arith.constant 0 : index
    %16 = vector.load %arg3[%c0_5, %c0_6] : memref<8x16xf32, #tpu.memory_space<vmem>>, vector<8x16xf32>
    tpu.vector_store %arg3[%c0_5, %c0_6], %15 {strides = array<i32>} : memref<8x16xf32, #tpu.memory_space<vmem>>, vector<8x16xf32>,
    return
  }
}

</mosaic_0001>

<llo_original>
// kernel: forward.1
$region0: #{forward.1}
  #allocation0 [shape = 'u32[]', space=smem, size = 0x4, offset = 0x4, fixed_abs, tag = 'smem constant byte address 0x4 - core index']
  #allocation1 [shape = 'u32[72,128]{1,0:T(1,128)}', space=vmem, size = 0x9000, scoped, tag = 'internal scratch']
  %s0 = inlined_call_operand.vmem [shape: f32[8,2], index: 0, kind: input, shape index: {}]
  %s1 = inlined_call_operand.vmem [shape: f32[2,16], index: 1, kind: input, shape index: {}]
  %s2 = inlined_call_operand.vmem [shape: f32[1,16], index: 2, kind: input, shape index: {}]
  %s3 = inlined_call_operand.hbm [shape: f32[8,16], index: 3, kind: output, shape index: {}]
  %s4 = sld [smem:[#allocation0]]
  $region22: #{forward.1} parent=0
    _
  %s6 = ssub.s32 1, %s4
  %s7 = scalar_select 0, %s6, %s4
  $region1: #{forward.1} parent=0
    #allocation2 [shape = 'u8[4096]{0}', space=vmem, size = 0x1000, scoped, tag = 'output window, operand 0, single buffered']
    #allocation3 [shape = 's32[1]{0}', space=sflag, size = 0x4, scoped, tag = 'scoped memory for forward.1']
    %8 = vsyncpa [#allocation3], 0
    // Predicated region
    $region2: #{forward.1} parent=1 // pred_check
      _
    $region3: #{forward.1} parent=1 // pred_check_branch
      %10 = sbr.rel (0) target = $region5
    $region4: #{forward.1} parent=1 // pred_region
      _
    $region5: #{forward.1} parent=1 // pred_fallthru
      _
    // Predicated region
    $region6: #{forward.1} parent=1 // pred_check
      _
    $region7: #{forward.1} parent=1 // pred_check_branch
      %12 = sbr.rel (0) target = $region9
    $region8: #{forward.1} parent=1 // pred_region
      _
    $region9: #{forward.1} parent=1 // pred_fallthru
      _
    // Predicated region
    $region10: #{forward.1} parent=1 // pred_check
      _
    $region11: #{forward.1} parent=1 // pred_check_branch
      %14 = sbr.rel (0) target = $region13
    $region12: #{forward.1} parent=1 // pred_region
      _
    $region13: #{forward.1} parent=1 // pred_fallthru
      _
    %v15 = vld [vmem:[%s0] sm:$0xff]
    %v16 = vld [vmem:[%s1] sm:$0x3]
    %v17 = vld [vmem:[%s2] sm:$0x1]
    %19 = vset.pattern.permute.xlu0 0
    %20 = vperm.xlu0 %19, %v15
    %v21 = vpop.permute.xlu0 %20
    %v23 = vperm.slane %v16, 0
    %v24 = vmul.f32 %v21, %v23
    %v26 = vperm.slane %v17, 0
    %v28 = vadd.f32 %v26, %v24
    %29 = vset.pattern.permute.xlu0 1
    %30 = vperm.xlu0 %29, %v15
    %v31 = vpop.permute.xlu0 %30
    %v33 = vperm.slane %v16, 1
    %v34 = vmul.f32 %v31, %v33
    %v35 = vadd.f32 %v28, %v34
    %vm36 = vcmask 130048
    %37 = vst.msk [vmem:[#allocation2] sm:$0xff] %vm36, %v35
    // Predicated region
    $region14: #{forward.1} parent=1 // pred_check
      _
    $region15: #{forward.1} parent=1 // pred_check_branch
      %39 = sbr.rel (0) target = $region17
    $region16: #{forward.1} parent=1 // pred_region
      %41 = vsyncadd [#allocation3], 0
      %s43 = sshll.u32 [#allocation2], 4
      %s44 = int_to_ptr.vmem [resolvable:$true] %s43
      %s45 = sshll.u32 %s3, 4
      %s46 = int_to_ptr.hbm [resolvable:$true] %s45
      %48 = dma.vmem_to_hbm [thread:$0]  %s44, 128, %s46, [#allocation3]
    $region17: #{forward.1} parent=1 // pred_fallthru
      _
    // Predicated region
    $region18: #{forward.1} parent=1 // pred_check
      _
    $region19: #{forward.1} parent=1 // pred_check_branch
      %50 = sbr.rel (0) target = $region21
    $region20: #{forward.1} parent=1 // pred_region
      %52 = dma.done [#allocation3], 128
    $region21: #{forward.1} parent=1 // pred_fallthru
      _
    %53 = vsyncpa [#allocation3], 1

</llo_original>
